<compile_context>
chip_gen: v7x
topology: tpu7x:2x2x1
jax: 0.10.0
libtpu: 0.0.40
codegen_flags: <defaults>
</compile_context>

<pallas_src>
import functools

import jax
import jax.numpy as jnp
import numpy as np
from jax import lax
from jax.experimental import pallas as pl
from jax.experimental.pallas import tpu as pltpu


# ----------------------------------------------------------------------------
# Fused kernel
# ----------------------------------------------------------------------------
def model_cnn_kernel(xs_ref, w1_ref, b1_ref, s1_ref,
                     w2_ref, b2_ref, s2_ref,
                     w3_ref, b3_ref, s3_ref,
                     wf_ref, sh_ref, bl1_ref,
                     wl2_ref, bl2_ref, a_ref, out_ref, *, kz):
    """Layout: features/channels on sublanes, (batch x length) packed on lanes.

    xs_ref : (C0*K1, B*Lin - K1 + 1)  layer-1 windows pre-stacked on host (bf16)
    w*_ref : (Cout, Cin*K)            merged conv weights (bf16)
    b*_ref : (Cout, 1)                conv biases (f32)
    s*_ref : (Lm, B*Lp)               pool stride/selection matrices (bf16)
    wf_ref : (16, C3*L3)              flatten+Linear1 weights, lane-major (bf16)
    sh_ref : (Lc, B)                  flatten column selector (bf16)
    wl2_ref: (7, 16), bl*_ref biases  second linear (bf16 / f32)
    a_ref  : (1,) SMEM                shared PReLU slope
    out_ref: (7, B)                   normalized probabilities
    """
    a = a_ref[0]

    def prelu(v):
        return jnp.where(v >= 0.0, v, a * v)

    def dot(lhs, rhs):
        # bf16 MXU inputs, f32 accumulation.
        return jnp.dot(lhs.astype(jnp.bfloat16), rhs.astype(jnp.bfloat16),
                       preferred_element_type=jnp.float32)

    def maxpool(y, s_ref):
        # Window max via static lane-shifted slices (VPU), then ONE selection
        # matmul that applies the stride and repacks per-sample columns
        # (cross-sample boundary columns of the packed layout are never selected).
        lm = y.shape[1] - (kz - 1)
        m = y[:, 0:lm]
        for j in range(1, kz):
            m = jnp.maximum(m, y[:, j:j + lm])
        return dot(m, s_ref[...])                      # (C, B*Lp) f32

    def stack_windows(x, k):
        # (C, L) -> (C*k, L-k+1): k lane-shifted windows stacked along sublanes
        # so the k-tap conv collapses to a single merged matmul.
        lc = x.shape[1] - k + 1
        return jnp.concatenate([x[:, j:j + lc] for j in range(k)], axis=0)

    # ---- conv stack (windows of layer 1 pre-stacked on the host) ----------
    y1 = prelu(dot(w1_ref[...], xs_ref[...]) + b1_ref[...])
    p1 = maxpool(y1, s1_ref)                           # (C1, B*Lp1)

    k2 = w2_ref.shape[1] // w1_ref.shape[0]
    y2 = prelu(dot(w2_ref[...], stack_windows(p1, k2)) + b2_ref[...])
    p2 = maxpool(y2, s2_ref)                           # (C2, B*Lp2)

    k3 = w3_ref.shape[1] // w2_ref.shape[0]
    y3 = prelu(dot(w3_ref[...], stack_windows(p2, k3)) + b3_ref[...])
    p3 = maxpool(y3, s3_ref)                           # (C3, B*Lp3)

    # ---- flatten + Linear(hidden, 16): a "conv" with kernel = stride = L3 ---
    l3 = wf_ref.shape[1] // w3_ref.shape[0]
    h_full = dot(wf_ref[...], stack_windows(p3, l3))   # (16, B*L3 - L3 + 1)
    h = prelu(dot(h_full, sh_ref[...]) + bl1_ref[...])  # (16, B)

    # ---- Linear(16, 7) + Softplus + normalize ------------------------------
    mean1 = dot(wl2_ref[...], h) + bl2_ref[...]        # (7, B)
    alpha = jnp.maximum(mean1, 0.0) + jnp.log(1.0 + jnp.exp(-jnp.abs(mean1)))
    inv = pl.reciprocal(jnp.sum(alpha, axis=0, keepdims=True), approx=True)
    out_ref[...] = alpha * inv                         # one lane-contiguous store


# ----------------------------------------------------------------------------
# Wrapper
# ----------------------------------------------------------------------------
def model_cnn_forward(x, params, *, kz, sr):
    x = x.astype(jnp.float32)
    B, c0, l_in = x.shape

    def merge_conv(w, b):
        # PyTorch (Cout, Cin, K) -> (Cout, K*Cin) so it matches the sublane
        # stacking order of the shifted windows; bias -> column.
        cout, cin, k = w.shape
        wm = jnp.transpose(w, (0, 2, 1)).reshape(cout, k * cin)
        return wm.astype(jnp.bfloat16), b.reshape(-1, 1).astype(jnp.float32), k

    w1m, b1, k1 = merge_conv(params["conv1_w"], params["conv1_b"])
    w2m, b2, k2 = merge_conv(params["conv2_w"], params["conv2_b"])
    w3m, b3, k3 = merge_conv(params["conv3_w"], params["conv3_b"])
    c1, c2, c3 = w1m.shape[0], w2m.shape[0], w3m.shape[0]

    # Batch packed along lanes: (C0, B*Lin); layer-1 windows pre-stacked here.
    xp = jnp.transpose(x, (1, 0, 2)).reshape(c0, B * l_in)
    lcat1 = B * l_in - k1 + 1
    xs = jnp.concatenate([xp[:, j:j + lcat1] for j in range(k1)],
                         axis=0).astype(jnp.bfloat16)

    def pool_selector(li, k, lcat):
        # Maps max-window columns (length lcat - kz + 1) of the batch-packed
        # conv output to packed pooled columns; boundary columns never selected.
        lo = li - k + 1
        lp = (lo - kz) // sr + 1
        lm = lcat - (kz - 1)
        sel = np.zeros((lm, B * lp), np.float32)
        for bb in range(B):
            for p in range(lp):
                sel[bb * li + p * sr, bb * lp + p] = 1.0
        return jnp.asarray(sel, jnp.bfloat16), lp

    sel1, lp1 = pool_selector(l_in, k1, lcat1)
    sel2, lp2 = pool_selector(lp1, k2, B * lp1 - k2 + 1)
    sel3, lp3 = pool_selector(lp2, k3, B * lp2 - k3 + 1)

    # flatten + Linear(hidden, 16): weights in lane-major (l, c) window order.
    l3 = lp3
    hidden = c3 * l3
    assert params["lin1_w"].shape[1] == hidden, "hiddensize mismatch"
    wf = jnp.transpose(params["lin1_w"].reshape(16, c3, l3),
                       (0, 2, 1)).reshape(16, l3 * c3).astype(jnp.bfloat16)
    lc = B * l3 - l3 + 1
    sh = np.zeros((lc, B), np.float32)
    for bb in range(B):
        sh[bb * l3, bb] = 1.0
    sh = jnp.asarray(sh, jnp.bfloat16)

    bl1 = params["lin1_b"].reshape(-1, 1).astype(jnp.float32)     # (16, 1)
    wl2 = params["lin2_w"].astype(jnp.bfloat16)                   # (7, 16)
    bl2 = params["lin2_b"].reshape(-1, 1).astype(jnp.float32)     # (7, 1)
    a = params["prelu_a"].reshape(1).astype(jnp.float32)          # PReLU slope

    n_out = wl2.shape[0]
    vmem = pl.BlockSpec(memory_space=pltpu.MemorySpace.VMEM)
    smem = pl.BlockSpec(memory_space=pltpu.MemorySpace.SMEM)

    out = pl.pallas_call(
        functools.partial(model_cnn_kernel, kz=kz),
        out_shape=jax.ShapeDtypeStruct((n_out, B), jnp.float32),
        in_specs=[vmem] * 15 + [smem],
        out_specs=vmem,
    )(xs, w1m, b1, sel1, w2m, b2, sel2, w3m, b3, sel3,
      wf, sh, bl1, wl2, bl2, a)
    return jnp.transpose(out)                                     # (B, 7)


# ----------------------------------------------------------------------------
# Parameter init (PyTorch-style uniform bounds) and pure-JAX reference
# ----------------------------------------------------------------------------
def init_params(key, oc, h, hiddensize, n_out=7):
    ks = jax.random.split(key, 10)

    def uconv(kw, kb, cout, cin, k):
        bound = 1.0 / np.sqrt(cin * k)
        return (jax.random.uniform(kw, (cout, cin, k), jnp.float32, -bound, bound),
                jax.random.uniform(kb, (cout,), jnp.float32, -bound, bound))

    def ulin(kw, kb, dout, din):
        bound = 1.0 / np.sqrt(din)
        return (jax.random.uniform(kw, (dout, din), jnp.float32, -bound, bound),
                jax.random.uniform(kb, (dout,), jnp.float32, -bound, bound))

    p = {}
    p["conv1_w"], p["conv1_b"] = uconv(ks[0], ks[1], oc[1], oc[0], h[0])
    p["conv2_w"], p["conv2_b"] = uconv(ks[2], ks[3], oc[2], oc[1], h[1])
    p["conv3_w"], p["conv3_b"] = uconv(ks[4], ks[5], oc[3], oc[2], h[2])
    p["lin1_w"], p["lin1_b"] = ulin(ks[6], ks[7], 16, hiddensize)
    p["lin2_w"], p["lin2_b"] = ulin(ks[8], ks[9], n_out, 16)
    p["prelu_a"] = jnp.full((1,), 0.25, jnp.float32)   # nn.PReLU() default
    return p


def reference_forward(x, params, *, kz, sr):
    a = params["prelu_a"][0]

    def prelu(v):
        return jnp.maximum(v, 0.0) + a * jnp.minimum(v, 0.0)

    def conv1d(v, w, b):
        out = lax.conv_general_dilated(v, w, window_strides=(1,), padding="VALID",
                                       dimension_numbers=("NCH", "OIH", "NCH"))
        return out + b[None, :, None]

    def maxpool(v):
        return lax.reduce_window(v, -jnp.inf, lax.max,
                                 (1, 1, kz), (1, 1, sr), "VALID")

    y = maxpool(prelu(conv1d(x, params["conv1_w"], params["conv1_b"])))
    y = maxpool(prelu(conv1d(y, params["conv2_w"], params["conv2_b"])))
    y = maxpool(prelu(conv1d(y, params["conv3_w"], params["conv3_b"])))
    flat = y.reshape(y.shape[0], -1)
    h = prelu(flat @ params["lin1_w"].T + params["lin1_b"])
    mean1 = h @ params["lin2_w"].T + params["lin2_b"]
    alpha = jax.nn.softplus(mean1)
    return alpha / jnp.sum(alpha, axis=-1, keepdims=True)


if __name__ == "__main__":
    oc = [4, 8, 16, 16]        # channel sizes
    h = [3, 3, 3]              # conv kernel sizes
    kz, sr = 2, 2              # maxpool kernel / stride
    B, l_in = 2, 64

    l1 = ((l_in - h[0] + 1) - kz) // sr + 1
    l2 = ((l1 - h[1] + 1) - kz) // sr + 1
    l3 = ((l2 - h[2] + 1) - kz) // sr + 1
    hiddensize = oc[3] * l3    # 16 * 6 = 96

    key = jax.random.PRNGKey(0)
    k_param, k_x = jax.random.split(key)
    params = init_params(k_param, oc, h, hiddensize)
    x = jax.random.normal(k_x, (B, oc[0], l_in), jnp.float32)

    prob = jax.block_until_ready(model_cnn_forward(x, params, kz=kz, sr=sr))
    ref = jax.block_until_ready(reference_forward(x, params, kz=kz, sr=sr))

    assert prob.shape == (B, 7)
    # approx-reciprocal normalization: rows sum to 1 up to EUP vrcp error.
    assert np.allclose(np.asarray(jnp.sum(prob, axis=-1)), 1.0, atol=5e-3)
    # Tolerance covers bf16 MXU inputs (f32 accumulation) vs XLA's f32 path.
    np.testing.assert_allclose(np.asarray(prob), np.asarray(ref),
                               rtol=2e-2, atol=2e-2)
    print("KERNEL_OK")
</pallas_src>

<mosaic_0001>
module attributes {stable_mosaic.version = 11 : i64} {
  func.func @model_cnn_kernel(%arg0: memref<12x126xbf16, #tpu.memory_space<vmem>>, %arg1: memref<8x12xbf16, #tpu.memory_space<vmem>>, %arg2: memref<8x1xf32, #tpu.memory_space<vmem>>, %arg3: memref<125x62xbf16, #tpu.memory_space<vmem>>, %arg4: memref<16x24xbf16, #tpu.memory_space<vmem>>, %arg5: memref<16x1xf32, #tpu.memory_space<vmem>>, %arg6: memref<59x28xbf16, #tpu.memory_space<vmem>>, %arg7: memref<16x48xbf16, #tpu.memory_space<vmem>>, %arg8: memref<16x1xf32, #tpu.memory_space<vmem>>, %arg9: memref<25x12xbf16, #tpu.memory_space<vmem>>, %arg10: memref<16x96xbf16, #tpu.memory_space<vmem>>, %arg11: memref<7x2xbf16, #tpu.memory_space<vmem>>, %arg12: memref<16x1xf32, #tpu.memory_space<vmem>>, %arg13: memref<7x16xbf16, #tpu.memory_space<vmem>>, %arg14: memref<7x1xf32, #tpu.memory_space<vmem>>, %arg15: memref<1xf32, #tpu.memory_space<smem>>, %arg16: memref<7x2xf32, #tpu.memory_space<vmem>>) attributes {dimension_semantics = [], scalar_prefetch = 0 : i64, scratch_operands = 0 : i64, tpu.core_type = #tpu.core_type<tc>} {
    %c0 = arith.constant 0 : index
    %0 = memref.load %arg15[%c0] : memref<1xf32, #tpu.memory_space<smem>>
    %c0_0 = arith.constant 0 : index
    %c0_1 = arith.constant 0 : index
    %1 = vector.load %arg1[%c0_0, %c0_1] : memref<8x12xbf16, #tpu.memory_space<vmem>>, vector<8x12xbf16>
    %c0_2 = arith.constant 0 : index
    %c0_3 = arith.constant 0 : index
    %2 = vector.load %arg0[%c0_2, %c0_3] : memref<12x126xbf16, #tpu.memory_space<vmem>>, vector<12x126xbf16>
    %cst = arith.constant dense<0.000000e+00> : vector<8x126xf32>
    %3 = tpu.matmul %1, %2, %cst {dimension_numbers = #tpu.dot_dimension_numbers<[1], [0], [0], [1], [0, 0, 1, 1], [], []>} : vector<8x12xbf16>, vector<12x126xbf16>, vector<8x126xf32> -> vector<8x126xf32>
    %c0_4 = arith.constant 0 : index
    %c0_5 = arith.constant 0 : index
    %4 = vector.load %arg2[%c0_4, %c0_5] : memref<8x1xf32, #tpu.memory_space<vmem>>, vector<8x1xf32>
    %5 = vector.broadcast %4 : vector<8x1xf32> to vector<8x126xf32>
    %6 = arith.addf %3, %5 : vector<8x126xf32>
    %cst_6 = arith.constant 0.000000e+00 : f32
    %7 = vector.broadcast %cst_6 : f32 to vector<8x126xf32>
    %8 = arith.cmpf oge, %6, %7 : vector<8x126xf32>
    %9 = vector.broadcast %0 : f32 to vector<8x126xf32>
    %10 = arith.mulf %9, %6 : vector<8x126xf32>
    %11 = arith.select %8, %6, %10 : vector<8x126xi1>, vector<8x126xf32>
    %12 = vector.extract_strided_slice %11 {offsets = [0, 0], sizes = [8, 125], strides = [1, 1]} : vector<8x126xf32> to vector<8x125xf32>
    %13 = vector.extract_strided_slice %11 {offsets = [0, 1], sizes = [8, 125], strides = [1, 1]} : vector<8x126xf32> to vector<8x125xf32>
    %14 = arith.maximumf %12, %13 : vector<8x125xf32>
    %c0_7 = arith.constant 0 : index
    %c0_8 = arith.constant 0 : index
    %15 = vector.load %arg3[%c0_7, %c0_8] : memref<125x62xbf16, #tpu.memory_space<vmem>>, vector<125x62xbf16>
    %16 = arith.truncf %14 : vector<8x125xf32> to vector<8x125xbf16>
    %cst_9 = arith.constant dense<0.000000e+00> : vector<8x62xf32>
    %17 = tpu.matmul %16, %15, %cst_9 {dimension_numbers = #tpu.dot_dimension_numbers<[1], [0], [0], [1], [0, 0, 1, 1], [], []>} : vector<8x125xbf16>, vector<125x62xbf16>, vector<8x62xf32> -> vector<8x62xf32>
    %c0_10 = arith.constant 0 : index
    %c0_11 = arith.constant 0 : index
    %18 = vector.load %arg4[%c0_10, %c0_11] : memref<16x24xbf16, #tpu.memory_space<vmem>>, vector<16x24xbf16>
    %19 = vector.extract_strided_slice %17 {offsets = [0, 0], sizes = [8, 60], strides = [1, 1]} : vector<8x62xf32> to vector<8x60xf32>
    %20 = vector.extract_strided_slice %17 {offsets = [0, 1], sizes = [8, 60], strides = [1, 1]} : vector<8x62xf32> to vector<8x60xf32>
    %21 = vector.extract_strided_slice %17 {offsets = [0, 2], sizes = [8, 60], strides = [1, 1]} : vector<8x62xf32> to vector<8x60xf32>
    %22 = tpu.concatenate %19, %20, %21 in 0 : vector<8x60xf32>, vector<8x60xf32>, vector<8x60xf32> -> vector<24x60xf32>
    %23 = arith.truncf %22 : vector<24x60xf32> to vector<24x60xbf16>
    %cst_12 = arith.constant dense<0.000000e+00> : vector<16x60xf32>
    %24 = tpu.matmul %18, %23, %cst_12 {dimension_numbers = #tpu.dot_dimension_numbers<[1], [0], [0], [1], [0, 0, 1, 1], [], []>} : vector<16x24xbf16>, vector<24x60xbf16>, vector<16x60xf32> -> vector<16x60xf32>
    %c0_13 = arith.constant 0 : index
    %c0_14 = arith.constant 0 : index
    %25 = vector.load %arg5[%c0_13, %c0_14] : memref<16x1xf32, #tpu.memory_space<vmem>>, vector<16x1xf32>
    %26 = vector.broadcast %25 : vector<16x1xf32> to vector<16x60xf32>
    %27 = arith.addf %24, %26 : vector<16x60xf32>
    %cst_15 = arith.constant 0.000000e+00 : f32
    %28 = vector.broadcast %cst_15 : f32 to vector<16x60xf32>
    %29 = arith.cmpf oge, %27, %28 : vector<16x60xf32>
    %30 = vector.broadcast %0 : f32 to vector<16x60xf32>
    %31 = arith.mulf %30, %27 : vector<16x60xf32>
    %32 = arith.select %29, %27, %31 : vector<16x60xi1>, vector<16x60xf32>
    %33 = vector.extract_strided_slice %32 {offsets = [0, 0], sizes = [16, 59], strides = [1, 1]} : vector<16x60xf32> to vector<16x59xf32>
    %34 = vector.extract_strided_slice %32 {offsets = [0, 1], sizes = [16, 59], strides = [1, 1]} : vector<16x60xf32> to vector<16x59xf32>
    %35 = arith.maximumf %33, %34 : vector<16x59xf32>
    %c0_16 = arith.constant 0 : index
    %c0_17 = arith.constant 0 : index
    %36 = vector.load %arg6[%c0_16, %c0_17] : memref<59x28xbf16, #tpu.memory_space<vmem>>, vector<59x28xbf16>
    %37 = arith.truncf %35 : vector<16x59xf32> to vector<16x59xbf16>
    %cst_18 = arith.constant dense<0.000000e+00> : vector<16x28xf32>
    %38 = tpu.matmul %37, %36, %cst_18 {dimension_numbers = #tpu.dot_dimension_numbers<[1], [0], [0], [1], [0, 0, 1, 1], [], []>} : vector<16x59xbf16>, vector<59x28xbf16>, vector<16x28xf32> -> vector<16x28xf32>
    %c0_19 = arith.constant 0 : index
    %c0_20 = arith.constant 0 : index
    %39 = vector.load %arg7[%c0_19, %c0_20] : memref<16x48xbf16, #tpu.memory_space<vmem>>, vector<16x48xbf16>
    %40 = vector.extract_strided_slice %38 {offsets = [0, 0], sizes = [16, 26], strides = [1, 1]} : vector<16x28xf32> to vector<16x26xf32>
    %41 = vector.extract_strided_slice %38 {offsets = [0, 1], sizes = [16, 26], strides = [1, 1]} : vector<16x28xf32> to vector<16x26xf32>
    %42 = vector.extract_strided_slice %38 {offsets = [0, 2], sizes = [16, 26], strides = [1, 1]} : vector<16x28xf32> to vector<16x26xf32>
    %43 = tpu.concatenate %40, %41, %42 in 0 : vector<16x26xf32>, vector<16x26xf32>, vector<16x26xf32> -> vector<48x26xf32>
    %44 = arith.truncf %43 : vector<48x26xf32> to vector<48x26xbf16>
    %cst_21 = arith.constant dense<0.000000e+00> : vector<16x26xf32>
    %45 = tpu.matmul %39, %44, %cst_21 {dimension_numbers = #tpu.dot_dimension_numbers<[1], [0], [0], [1], [0, 0, 1, 1], [], []>} : vector<16x48xbf16>, vector<48x26xbf16>, vector<16x26xf32> -> vector<16x26xf32>
    %c0_22 = arith.constant 0 : index
    %c0_23 = arith.constant 0 : index
    %46 = vector.load %arg8[%c0_22, %c0_23] : memref<16x1xf32, #tpu.memory_space<vmem>>, vector<16x1xf32>
    %47 = vector.broadcast %46 : vector<16x1xf32> to vector<16x26xf32>
    %48 = arith.addf %45, %47 : vector<16x26xf32>
    %cst_24 = arith.constant 0.000000e+00 : f32
    %49 = vector.broadcast %cst_24 : f32 to vector<16x26xf32>
    %50 = arith.cmpf oge, %48, %49 : vector<16x26xf32>
    %51 = vector.broadcast %0 : f32 to vector<16x26xf32>
    %52 = arith.mulf %51, %48 : vector<16x26xf32>
    %53 = arith.select %50, %48, %52 : vector<16x26xi1>, vector<16x26xf32>
    %54 = vector.extract_strided_slice %53 {offsets = [0, 0], sizes = [16, 25], strides = [1, 1]} : vector<16x26xf32> to vector<16x25xf32>
    %55 = vector.extract_strided_slice %53 {offsets = [0, 1], sizes = [16, 25], strides = [1, 1]} : vector<16x26xf32> to vector<16x25xf32>
    %56 = arith.maximumf %54, %55 : vector<16x25xf32>
    %c0_25 = arith.constant 0 : index
    %c0_26 = arith.constant 0 : index
    %57 = vector.load %arg9[%c0_25, %c0_26] : memref<25x12xbf16, #tpu.memory_space<vmem>>, vector<25x12xbf16>
    %58 = arith.truncf %56 : vector<16x25xf32> to vector<16x25xbf16>
    %cst_27 = arith.constant dense<0.000000e+00> : vector<16x12xf32>
    %59 = tpu.matmul %58, %57, %cst_27 {dimension_numbers = #tpu.dot_dimension_numbers<[1], [0], [0], [1], [0, 0, 1, 1], [], []>} : vector<16x25xbf16>, vector<25x12xbf16>, vector<16x12xf32> -> vector<16x12xf32>
    %c0_28 = arith.constant 0 : index
    %c0_29 = arith.constant 0 : index
    %60 = vector.load %arg10[%c0_28, %c0_29] : memref<16x96xbf16, #tpu.memory_space<vmem>>, vector<16x96xbf16>
    %61 = vector.extract_strided_slice %59 {offsets = [0, 0], sizes = [16, 7], strides = [1, 1]} : vector<16x12xf32> to vector<16x7xf32>
    %62 = vector.extract_strided_slice %59 {offsets = [0, 1], sizes = [16, 7], strides = [1, 1]} : vector<16x12xf32> to vector<16x7xf32>
    %63 = vector.extract_strided_slice %59 {offsets = [0, 2], sizes = [16, 7], strides = [1, 1]} : vector<16x12xf32> to vector<16x7xf32>
    %64 = vector.extract_strided_slice %59 {offsets = [0, 3], sizes = [16, 7], strides = [1, 1]} : vector<16x12xf32> to vector<16x7xf32>
    %65 = vector.extract_strided_slice %59 {offsets = [0, 4], sizes = [16, 7], strides = [1, 1]} : vector<16x12xf32> to vector<16x7xf32>
    %66 = vector.extract_strided_slice %59 {offsets = [0, 5], sizes = [16, 7], strides = [1, 1]} : vector<16x12xf32> to vector<16x7xf32>
    %67 = tpu.concatenate %61, %62, %63, %64, %65, %66 in 0 : vector<16x7xf32>, vector<16x7xf32>, vector<16x7xf32>, vector<16x7xf32>, vector<16x7xf32>, vector<16x7xf32> -> vector<96x7xf32>
    %68 = arith.truncf %67 : vector<96x7xf32> to vector<96x7xbf16>
    %cst_30 = arith.constant dense<0.000000e+00> : vector<16x7xf32>
    %69 = tpu.matmul %60, %68, %cst_30 {dimension_numbers = #tpu.dot_dimension_numbers<[1], [0], [0], [1], [0, 0, 1, 1], [], []>} : vector<16x96xbf16>, vector<96x7xbf16>, vector<16x7xf32> -> vector<16x7xf32>
    %c0_31 = arith.constant 0 : index
    %c0_32 = arith.constant 0 : index
    %70 = vector.load %arg11[%c0_31, %c0_32] : memref<7x2xbf16, #tpu.memory_space<vmem>>, vector<7x2xbf16>
    %71 = arith.truncf %69 : vector<16x7xf32> to vector<16x7xbf16>
    %cst_33 = arith.constant dense<0.000000e+00> : vector<16x2xf32>
    %72 = tpu.matmul %71, %70, %cst_33 {dimension_numbers = #tpu.dot_dimension_numbers<[1], [0], [0], [1], [0, 0, 1, 1], [], []>} : vector<16x7xbf16>, vector<7x2xbf16>, vector<16x2xf32> -> vector<16x2xf32>
    %c0_34 = arith.constant 0 : index
    %c0_35 = arith.constant 0 : index
    %73 = vector.load %arg12[%c0_34, %c0_35] : memref<16x1xf32, #tpu.memory_space<vmem>>, vector<16x1xf32>
    %74 = vector.broadcast %73 : vector<16x1xf32> to vector<16x2xf32>
    %75 = arith.addf %72, %74 : vector<16x2xf32>
    %cst_36 = arith.constant 0.000000e+00 : f32
    %76 = vector.broadcast %cst_36 : f32 to vector<16x2xf32>
    %77 = arith.cmpf oge, %75, %76 : vector<16x2xf32>
    %78 = vector.broadcast %0 : f32 to vector<16x2xf32>
    %79 = arith.mulf %78, %75 : vector<16x2xf32>
    %80 = arith.select %77, %75, %79 : vector<16x2xi1>, vector<16x2xf32>
    %c0_37 = arith.constant 0 : index
    %c0_38 = arith.constant 0 : index
    %81 = vector.load %arg13[%c0_37, %c0_38] : memref<7x16xbf16, #tpu.memory_space<vmem>>, vector<7x16xbf16>
    %82 = arith.truncf %80 : vector<16x2xf32> to vector<16x2xbf16>
    %cst_39 = arith.constant dense<0.000000e+00> : vector<7x2xf32>
    %83 = tpu.matmul %81, %82, %cst_39 {dimension_numbers = #tpu.dot_dimension_numbers<[1], [0], [0], [1], [0, 0, 1, 1], [], []>} : vector<7x16xbf16>, vector<16x2xbf16>, vector<7x2xf32> -> vector<7x2xf32>
    %c0_40 = arith.constant 0 : index
    %c0_41 = arith.constant 0 : index
    %84 = vector.load %arg14[%c0_40, %c0_41] : memref<7x1xf32, #tpu.memory_space<vmem>>, vector<7x1xf32>
    %85 = vector.broadcast %84 : vector<7x1xf32> to vector<7x2xf32>
    %86 = arith.addf %83, %85 : vector<7x2xf32>
    %cst_42 = arith.constant 0.000000e+00 : f32
    %87 = vector.broadcast %cst_42 : f32 to vector<7x2xf32>
    %88 = arith.maximumf %86, %87 : vector<7x2xf32>
    %89 = math.absf %86 : vector<7x2xf32>
    %cst_43 = arith.constant 0.000000e+00 : f32
    %90 = vector.broadcast %cst_43 : f32 to vector<7x2xf32>
    %91 = arith.subf %90, %89 : vector<7x2xf32>
    %92 = math.exp %91 : vector<7x2xf32>
    %cst_44 = arith.constant 1.000000e+00 : f32
    %93 = vector.broadcast %cst_44 : f32 to vector<7x2xf32>
    %94 = arith.addf %93, %92 : vector<7x2xf32>
    %95 = math.log %94 : vector<7x2xf32>
    %96 = arith.addf %88, %95 : vector<7x2xf32>
    %cst_45 = arith.constant dense<0.000000e+00> : vector<2xf32>
    %97 = vector.multi_reduction <add>, %96, %cst_45 [0] : vector<7x2xf32> to vector<2xf32>
    %98 = vector.shape_cast %97 : vector<2xf32> to vector<1x2xf32>
    %99 = tpu.reciprocal %98 {approx = true} : vector<1x2xf32> -> vector<1x2xf32>
    %100 = vector.broadcast %99 : vector<1x2xf32> to vector<7x2xf32>
    %101 = arith.mulf %96, %100 : vector<7x2xf32>
    %c0_46 = arith.constant 0 : index
    %c0_47 = arith.constant 0 : index
    %102 = vector.load %arg16[%c0_46, %c0_47] : memref<7x2xf32, #tpu.memory_space<vmem>>, vector<7x2xf32>
    tpu.vector_store %arg16[%c0_46, %c0_47], %101 {strides = array<i32>} : memref<7x2xf32, #tpu.memory_space<vmem>>, vector<7x2xf32>,
    return
  }
}

</mosaic_0001>

<llo_original>
// kernel: tpu_custom_call.1
$region0: #{tpu_custom_call.1}
  #allocation0 [shape = 'u32[]', space=smem, size = 0x4, offset = 0x4, fixed_abs, tag = 'smem constant byte address 0x4 - core index']
  #allocation1 [shape = 'u32[144,128]{1,0:T(1,128)}', space=vmem, size = 0x12000, scoped, tag = 'internal scratch']
  #allocation2 [shape = 'f32[1]{0:T(128)S(6)}', space=smem, size = 0x200, scoped, tag = 'scoped memory for tpu_custom_call.1']
  %s0 = inlined_call_operand.vmem [shape: bf16[12,126], index: 0, kind: input, shape index: {}]
  %s1 = inlined_call_operand.vmem [shape: bf16[8,12], index: 1, kind: input, shape index: {}]
  %s2 = inlined_call_operand.vmem [shape: f32[8,1], index: 2, kind: input, shape index: {}]
  %s3 = inlined_call_operand.vmem [shape: bf16[125,62], index: 3, kind: input, shape index: {}]
  %s4 = inlined_call_operand.vmem [shape: bf16[16,24], index: 4, kind: input, shape index: {}]
  %s5 = inlined_call_operand.vmem [shape: f32[16,1], index: 5, kind: input, shape index: {}]
  %s6 = inlined_call_operand.vmem [shape: bf16[59,28], index: 6, kind: input, shape index: {}]
  %s7 = inlined_call_operand.vmem [shape: bf16[16,48], index: 7, kind: input, shape index: {}]
  %s8 = inlined_call_operand.vmem [shape: f32[16,1], index: 8, kind: input, shape index: {}]
  %s9 = inlined_call_operand.vmem [shape: bf16[25,12], index: 9, kind: input, shape index: {}]
  %s10 = inlined_call_operand.vmem [shape: bf16[16,96], index: 10, kind: input, shape index: {}]
  %s11 = inlined_call_operand.vmem [shape: bf16[7,2], index: 11, kind: input, shape index: {}]
  %s12 = inlined_call_operand.vmem [shape: f32[16,1], index: 12, kind: input, shape index: {}]
  %s13 = inlined_call_operand.vmem [shape: bf16[7,16], index: 13, kind: input, shape index: {}]
  %s14 = inlined_call_operand.vmem [shape: f32[7,1], index: 14, kind: input, shape index: {}]
  %s15 = inlined_call_operand.<no memory space> [shape: f32[1], index: 15, kind: input, shape index: {}]
  %s16 = inlined_call_operand.vmem [shape: f32[7,2], index: 16, kind: output, shape index: {}]
  %s17 = sld [smem:[#allocation0]]
  $region74: #{tpu_custom_call.1} parent=0
    _
  %s19 = ssub.s32 1, %s17
  %s20 = scalar_select 0, %s19, %s17
  %21 = sst [smem:[#allocation2]] %s15
  // Predicated region
  $region2: #{tpu_custom_call.1} parent=0 // pred_check
    _
  $region3: #{tpu_custom_call.1} parent=0 // pred_check_branch
    %23 = sbr.rel (0) target = $region5
  $region4: #{tpu_custom_call.1} parent=0 // pred_region
    _
  $region5: #{tpu_custom_call.1} parent=0 // pred_fallthru
    _
  // Predicated region
  $region6: #{tpu_custom_call.1} parent=0 // pred_check
    _
  $region7: #{tpu_custom_call.1} parent=0 // pred_check_branch
    %25 = sbr.rel (0) target = $region9
  $region8: #{tpu_custom_call.1} parent=0 // pred_region
    _
  $region9: #{tpu_custom_call.1} parent=0 // pred_fallthru
    _
  // Predicated region
  $region10: #{tpu_custom_call.1} parent=0 // pred_check
    _
  $region11: #{tpu_custom_call.1} parent=0 // pred_check_branch
    %27 = sbr.rel (0) target = $region13
  $region12: #{tpu_custom_call.1} parent=0 // pred_region
    _
  $region13: #{tpu_custom_call.1} parent=0 // pred_fallthru
    _
  // Predicated region
  $region14: #{tpu_custom_call.1} parent=0 // pred_check
    _
  $region15: #{tpu_custom_call.1} parent=0 // pred_check_branch
    %29 = sbr.rel (0) target = $region17
  $region16: #{tpu_custom_call.1} parent=0 // pred_region
    _
  $region17: #{tpu_custom_call.1} parent=0 // pred_fallthru
    _
  // Predicated region
  $region18: #{tpu_custom_call.1} parent=0 // pred_check
    _
  $region19: #{tpu_custom_call.1} parent=0 // pred_check_branch
    %31 = sbr.rel (0) target = $region21
  $region20: #{tpu_custom_call.1} parent=0 // pred_region
    _
  $region21: #{tpu_custom_call.1} parent=0 // pred_fallthru
    _
  // Predicated region
  $region22: #{tpu_custom_call.1} parent=0 // pred_check
    _
  $region23: #{tpu_custom_call.1} parent=0 // pred_check_branch
    %33 = sbr.rel (0) target = $region25
  $region24: #{tpu_custom_call.1} parent=0 // pred_region
    _
  $region25: #{tpu_custom_call.1} parent=0 // pred_fallthru
    _
  // Predicated region
  $region26: #{tpu_custom_call.1} parent=0 // pred_check
    _
  $region27: #{tpu_custom_call.1} parent=0 // pred_check_branch
    %35 = sbr.rel (0) target = $region29
  $region28: #{tpu_custom_call.1} parent=0 // pred_region
    _
  $region29: #{tpu_custom_call.1} parent=0 // pred_fallthru
    _
  // Predicated region
  $region30: #{tpu_custom_call.1} parent=0 // pred_check
    _
  $region31: #{tpu_custom_call.1} parent=0 // pred_check_branch
    %37 = sbr.rel (0) target = $region33
  $region32: #{tpu_custom_call.1} parent=0 // pred_region
    _
  $region33: #{tpu_custom_call.1} parent=0 // pred_fallthru
    _
  // Predicated region
  $region34: #{tpu_custom_call.1} parent=0 // pred_check
    _
  $region35: #{tpu_custom_call.1} parent=0 // pred_check_branch
    %39 = sbr.rel (0) target = $region37
  $region36: #{tpu_custom_call.1} parent=0 // pred_region
    _
  $region37: #{tpu_custom_call.1} parent=0 // pred_fallthru
    _
  // Predicated region
  $region38: #{tpu_custom_call.1} parent=0 // pred_check
    _
  $region39: #{tpu_custom_call.1} parent=0 // pred_check_branch
    %41 = sbr.rel (0) target = $region41
  $region40: #{tpu_custom_call.1} parent=0 // pred_region
    _
  $region41: #{tpu_custom_call.1} parent=0 // pred_fallthru
    _
  // Predicated region
  $region42: #{tpu_custom_call.1} parent=0 // pred_check
    _
  $region43: #{tpu_custom_call.1} parent=0 // pred_check_branch
    %43 = sbr.rel (0) target = $region45
  $region44: #{tpu_custom_call.1} parent=0 // pred_region
    _
  $region45: #{tpu_custom_call.1} parent=0 // pred_fallthru
    _
  // Predicated region
  $region46: #{tpu_custom_call.1} parent=0 // pred_check
    _
  $region47: #{tpu_custom_call.1} parent=0 // pred_check_branch
    %45 = sbr.rel (0) target = $region49
  $region48: #{tpu_custom_call.1} parent=0 // pred_region
    _
  $region49: #{tpu_custom_call.1} parent=0 // pred_fallthru
    _
  // Predicated region
  $region50: #{tpu_custom_call.1} parent=0 // pred_check
    _
  $region51: #{tpu_custom_call.1} parent=0 // pred_check_branch
    %47 = sbr.rel (0) target = $region53
  $region52: #{tpu_custom_call.1} parent=0 // pred_region
    _
  $region53: #{tpu_custom_call.1} parent=0 // pred_fallthru
    _
  // Predicated region
  $region54: #{tpu_custom_call.1} parent=0 // pred_check
    _
  $region55: #{tpu_custom_call.1} parent=0 // pred_check_branch
    %49 = sbr.rel (0) target = $region57
  $region56: #{tpu_custom_call.1} parent=0 // pred_region
    _
  $region57: #{tpu_custom_call.1} parent=0 // pred_fallthru
    _
  // Predicated region
  $region58: #{tpu_custom_call.1} parent=0 // pred_check
    _
  $region59: #{tpu_custom_call.1} parent=0 // pred_check_branch
    %51 = sbr.rel (0) target = $region61
  $region60: #{tpu_custom_call.1} parent=0 // pred_region
    _
  $region61: #{tpu_custom_call.1} parent=0 // pred_fallthru
    _
  // Predicated region
  $region62: #{tpu_custom_call.1} parent=0 // pred_check
    _
  $region63: #{tpu_custom_call.1} parent=0 // pred_check_branch
    %53 = sbr.rel (0) target = $region65
  $region64: #{tpu_custom_call.1} parent=0 // pred_region
    _
  $region65: #{tpu_custom_call.1} parent=0 // pred_fallthru
    _
  %s55 = sld [smem:[#allocation2]]
  %v56 = vld [vmem:[%s1] sm:$0xf]
  %v57 = vld [vmem:[%s0] sm:$0xf]
  %v58 = vld [vmem:[%s0 + $0x4] sm:$0x3]
  %v59 = vld [vmem:[%s2] sm:$0xff]
  %61 = vset.pattern.permute.xlu0 0
  %62 = vperm.xlu0 %61, %v59
  %v63 = vpop.permute.xlu0 %62
  %v67 = vunpack.c.l.b16 %v57
  %v68 = vunpack.c.l.b16 %v58
  %v69 = vpack.c.b16 %v68, %v67
  %vm70 = vcmask 97280
  %v72 = vsel %vm70, %v56, 0
  %vm74 = vcmask 1045504
  %v76 = vsel %vm74, %v69, 0
  %78 = vmatprep.subr.bf16.mxu0 0
  %79 = vmatpush1.bf16.msra.mxu0 %v76
  %80 = vmatprep.subr.bf16.mxu0 0
  %81 = vmatpush1.bf16.msra.mxu0 0
  %82 = vmatprep.subr.bf16.mxu0 0
  %83 = vmatpush1.bf16.msra.mxu0 0
  %84 = vmatprep.subr.bf16.mxu0 0
  %85 = vmatpush1.bf16.msra.mxu0 0
  %86 = vmatprep.subr.bf16.mxu0 0
  %87 = vmatpush1.bf16.msra.mxu0 0
  %88 = vmatprep.subr.bf16.mxu0 0
  %89 = vmatpush1.bf16.msra.mxu0 0
  %90 = vmatprep.subr.bf16.mxu0 0
  %91 = vmatpush1.bf16.msra.mxu0 0
  %92 = vmatprep.subr.bf16.mxu0 0
  %93 = vmatpush1.bf16.msra.mxu0 0
  %94 = vmatprep.subr.bf16.mxu0 0
  %95 = vmatpush1.bf16.msra.mxu0 0
  %96 = vmatprep.subr.bf16.mxu0 0
  %97 = vmatpush1.bf16.msra.mxu0 0
  %98 = vmatprep.subr.bf16.mxu0 0
  %99 = vmatpush1.bf16.msra.mxu0 0
  %100 = vmatprep.subr.bf16.mxu0 0
  %101 = vmatpush1.bf16.msra.mxu0 0
  %102 = vmatprep.subr.bf16.mxu0 0
  %103 = vmatpush1.bf16.msra.mxu0 0
  %104 = vmatprep.subr.bf16.mxu0 0
  %105 = vmatpush1.bf16.msra.mxu0 0
  %106 = vmatprep.subr.bf16.mxu0 0
  %107 = vmatpush1.bf16.msra.mxu0 0
  %108 = vmatprep.subr.bf16.mxu0 0
  %109 = vmatpush1.bf16.msra.mxu0 0
  %110 = vmatprep.mubr.bf16.mxu0 0
  %111 = vmatmul.mubr.bf16.gmra.mrb[0].mxu0 %v72
  %v112 = vpop.f32.mrb[0].mxu0
  %v113 = vadd.f32 %v63, %v112
  %v114 = vpop.f32.mrb[0].mxu0
  %v115 = vpop.f32.mrb[0].mxu0
  %v116 = vpop.f32.mrb[0].mxu0
  %117 = vdwg.mxu0
  %vm118 = vcmp.ge.f32.partialorder %v113, 0.0
  %v119 = vstv %s55
  %v120 = vmul.f32 %v119, %v113
  %v121 = vsel %vm118, %v113, %v120
  %123 = vrot.lane.b32.xlu0 %v121, 127
  %v124 = vpop.permute.xlu0 %123
  %v126 = vmax.f32 %v121, %v124
  %v127 = vld [vmem:[%s3] sm:$0xf]
  %v128 = vld [vmem:[%s3 + $0x4] sm:$0xf]
  %v129 = vld [vmem:[%s3 + $0x8] sm:$0xf]
  %v130 = vld [vmem:[%s3 + $0xc] sm:$0xf]
  %v131 = vld [vmem:[%s3 + $0x10] sm:$0xf]
  %v132 = vld [vmem:[%s3 + $0x14] sm:$0xf]
  %v133 = vld [vmem:[%s3 + $0x18] sm:$0xf]
  %v134 = vld [vmem:[%s3 + $0x1c] sm:$0xf]
  %v135 = vld [vmem:[%s3 + $0x20] sm:$0xf]
  %v136 = vld [vmem:[%s3 + $0x24] sm:$0xf]
  %v137 = vld [vmem:[%s3 + $0x28] sm:$0xf]
  %v138 = vld [vmem:[%s3 + $0x2c] sm:$0xf]
  %v139 = vld [vmem:[%s3 + $0x30] sm:$0xf]
  %v140 = vld [vmem:[%s3 + $0x34] sm:$0xf]
  %v141 = vld [vmem:[%s3 + $0x38] sm:$0xf]
  %v142 = vld [vmem:[%s3 + $0x3c] sm:$0x7]
  %v143 = vpack.c.bf16 %v126, %v126
  %v160 = vunpack.c.l.b16 %v127
  %v161 = vunpack.c.l.b16 %v128
  %v162 = vunpack.c.l.b16 %v129
  %v163 = vunpack.c.l.b16 %v130
  %v164 = vunpack.c.l.b16 %v131
  %v165 = vunpack.c.l.b16 %v132
  %v166 = vunpack.c.l.b16 %v133
  %v167 = vunpack.c.l.b16 %v134
  %v168 = vunpack.c.l.b16 %v135
  %v169 = vunpack.c.l.b16 %v136
  %v170 = vunpack.c.l.b16 %v137
  %v171 = vunpack.c.l.b16 %v138
  %v172 = vunpack.c.l.b16 %v139
  %v173 = vunpack.c.l.b16 %v140
  %v174 = vunpack.c.l.b16 %v141
  %v175 = vunpack.c.l.b16 %v142
  %v176 = vpack.c.b16 %v161, %v160
  %v177 = vpack.c.b16 %v163, %v162
  %v178 = vpack.c.b16 %v165, %v164
  %v179 = vpack.c.b16 %v167, %v166
  %v180 = vpack.c.b16 %v169, %v168
  %v181 = vpack.c.b16 %v171, %v170
  %v182 = vpack.c.b16 %v173, %v172
  %v183 = vpack.c.b16 %v175, %v174
  %vm191 = vcmask 1022976
  %v193 = vsel %vm191, %v143, 0
  %vm195 = vcmask 1046528
  %v196 = vsel %vm74, 4294967295, 65535
  %v197 = vsel %vm195, %v196, 0
  %v199 = vand.u32 %v183, %v197
  %201 = vmatprep.subr.bf16.mxu0 0
  %202 = vmatpush1.bf16.msra.mxu0 %v176
  %203 = vmatprep.subr.bf16.mxu0 0
  %204 = vmatpush1.bf16.msra.mxu0 %v177
  %205 = vmatprep.subr.bf16.mxu0 0
  %206 = vmatpush1.bf16.msra.mxu0 %v178
  %207 = vmatprep.subr.bf16.mxu0 0
  %208 = vmatpush1.bf16.msra.mxu0 %v179
  %209 = vmatprep.subr.bf16.mxu0 0
  %210 = vmatpush1.bf16.msra.mxu0 %v180
  %211 = vmatprep.subr.bf16.mxu0 0
  %212 = vmatpush1.bf16.msra.mxu0 %v181
  %213 = vmatprep.subr.bf16.mxu0 0
  %214 = vmatpush1.bf16.msra.mxu0 %v182
  %215 = vmatprep.subr.bf16.mxu0 0
  %216 = vmatpush1.bf16.msra.mxu0 %v199
  %217 = vmatprep.subr.bf16.mxu0 0
  %218 = vmatpush1.bf16.msra.mxu0 0
  %219 = vmatprep.subr.bf16.mxu0 0
  %220 = vmatpush1.bf16.msra.mxu0 0
  %221 = vmatprep.subr.bf16.mxu0 0
  %222 = vmatpush1.bf16.msra.mxu0 0
  %223 = vmatprep.subr.bf16.mxu0 0
  %224 = vmatpush1.bf16.msra.mxu0 0
  %225 = vmatprep.subr.bf16.mxu0 0
  %226 = vmatpush1.bf16.msra.mxu0 0
  %227 = vmatprep.subr.bf16.mxu0 0
  %228 = vmatpush1.bf16.msra.mxu0 0
  %229 = vmatprep.subr.bf16.mxu0 0
  %230 = vmatpush1.bf16.msra.mxu0 0
  %231 = vmatprep.subr.bf16.mxu0 0
  %232 = vmatpush1.bf16.msra.mxu0 0
  %233 = vmatprep.mubr.bf16.mxu0 0
  %234 = vmatmul.mubr.bf16.gmra.mrb[0].mxu0 %v193
  %v235 = vpop.f32.mrb[0].mxu0
  %v236 = vadd.f32 0.0, %v235
  %v237 = vpop.f32.mrb[0].mxu0
  %v238 = vpop.f32.mrb[0].mxu0
  %v239 = vpop.f32.mrb[0].mxu0
  %240 = vdwg.mxu0
  %v241 = vld [vmem:[%s4] sm:$0xf]
  %v242 = vld [vmem:[%s4 + $0x4] sm:$0xf]
  %244 = vrot.lane.b32.xlu0 %v236, 127
  %v245 = vpop.permute.xlu0 %244
  %247 = vrot.lane.b32.xlu0 %v236, 126
  %v248 = vpop.permute.xlu0 %247
  %v250 = vpack.c.bf16 %v245, %v236
  %v251 = vpack.c.bf16 %v248, %v248
  %v252 = vld [vmem:[%s5] sm:$0xff]
  %v253 = vld [vmem:[%s5 + $0x8] sm:$0xff]
  %255 = vset.pattern.permute.xlu0 0
  %256 = vperm.xlu0 %255, %v252
  %v257 = vpop.permute.xlu0 %256
  %260 = vset.pattern.permute.xlu0 0
  %261 = vperm.xlu0 %260, %v253
  %v262 = vpop.permute.xlu0 %261
  %v266 = vunpack.c.l.b16 %v241
  %v267 = vunpack.c.l.b16 %v242
  %v268 = vpack.c.b16 %v267, %v266
  %vm269 = vcmask 195584
  %v271 = vsel %vm269, %v268, 0
  %vm273 = vcmask 1043456
  %v275 = vsel %vm273, %v251, 0
  %277 = vmatprep.subr.bf16.mxu0 0
  %278 = vmatpush1.bf16.msra.mxu0 %v250
  %279 = vmatprep.subr.bf16.mxu0 0
  %280 = vmatpush1.bf16.msra.mxu0 %v275
  %281 = vmatprep.subr.bf16.mxu0 0
  %282 = vmatpush1.bf16.msra.mxu0 0
  %283 = vmatprep.subr.bf16.mxu0 0
  %284 = vmatpush1.bf16.msra.mxu0 0
  %285 = vmatprep.subr.bf16.mxu0 0
  %286 = vmatpush1.bf16.msra.mxu0 0
  %287 = vmatprep.subr.bf16.mxu0 0
  %288 = vmatpush1.bf16.msra.mxu0 0
  %289 = vmatprep.subr.bf16.mxu0 0
  %290 = vmatpush1.bf16.msra.mxu0 0
  %291 = vmatprep.subr.bf16.mxu0 0
  %292 = vmatpush1.bf16.msra.mxu0 0
  %293 = vmatprep.subr.bf16.mxu0 0
  %294 = vmatpush1.bf16.msra.mxu0 0
  %295 = vmatprep.subr.bf16.mxu0 0
  %296 = vmatpush1.bf16.msra.mxu0 0
  %297 = vmatprep.subr.bf16.mxu0 0
  %298 = vmatpush1.bf16.msra.mxu0 0
  %299 = vmatprep.subr.bf16.mxu0 0
  %300 = vmatpush1.bf16.msra.mxu0 0
  %301 = vmatprep.subr.bf16.mxu0 0
  %302 = vmatpush1.bf16.msra.mxu0 0
  %303 = vmatprep.subr.bf16.mxu0 0
  %304 = vmatpush1.bf16.msra.mxu0 0
  %305 = vmatprep.subr.bf16.mxu0 0
  %306 = vmatpush1.bf16.msra.mxu0 0
  %307 = vmatprep.subr.bf16.mxu0 0
  %308 = vmatpush1.bf16.msra.mxu0 0
  %309 = vmatprep.mubr.bf16.mxu0 0
  %310 = vmatmul.mubr.bf16.gmra.mrb[0].mxu0 %v271
  %v311 = vpop.f32.mrb[0].mxu0
  %v312 = vadd.f32 %v257, %v311
  %v313 = vpop.f32.mrb[0].mxu0
  %v314 = vpop.f32.mrb[0].mxu0
  %v315 = vadd.f32 %v262, %v314
  %v316 = vpop.f32.mrb[0].mxu0
  %317 = vdwg.mxu0
  %vm318 = vcmp.ge.f32.partialorder %v312, 0.0
  %vm319 = vcmp.ge.f32.partialorder %v315, 0.0
  %v320 = vmul.f32 %v119, %v312
  %v321 = vmul.f32 %v119, %v315
  %v322 = vsel %vm318, %v312, %v320
  %v323 = vsel %vm319, %v315, %v321
  %326 = vrot.lane.b32.xlu0 %v322, 127
  %v327 = vpop.permute.xlu0 %326
  %328 = vrot.lane.b32.xlu0 %v323, 127
  %v329 = vpop.permute.xlu0 %328
  %v332 = vmax.f32 %v322, %v327
  %v333 = vmax.f32 %v323, %v329
  %v334 = vld [vmem:[%s6] sm:$0xf]
  %v335 = vld [vmem:[%s6 + $0x4] sm:$0xf]
  %v336 = vld [vmem:[%s6 + $0x8] sm:$0xf]
  %v337 = vld [vmem:[%s6 + $0xc] sm:$0xf]
  %v338 = vld [vmem:[%s6 + $0x10] sm:$0xf]
  %v339 = vld [vmem:[%s6 + $0x14] sm:$0xf]
  %v340 = vld [vmem:[%s6 + $0x18] sm:$0xf]
  %v341 = vld [vmem:[%s6 + $0x1c] sm:$0x3]
  %v342 = vpack.c.bf16 %v333, %v332
  %v351 = vunpack.c.l.b16 %v334
  %v352 = vunpack.c.l.b16 %v335
  %v353 = vunpack.c.l.b16 %v336
  %v354 = vunpack.c.l.b16 %v337
  %v355 = vunpack.c.l.b16 %v338
  %v356 = vunpack.c.l.b16 %v339
  %v357 = vunpack.c.l.b16 %v340
  %v358 = vunpack.c.l.b16 %v341
  %v359 = vpack.c.b16 %v352, %v351
  %v360 = vpack.c.b16 %v354, %v353
  %v361 = vpack.c.b16 %v356, %v355
  %v362 = vpack.c.b16 %v358, %v357
  %vm366 = vcmask 482304
  %v368 = vsel %vm366, %v342, 0
  %vm370 = vcmask 1044480
  %v371 = vsel %vm370, 4294967295, 65535
  %v372 = vsel %vm74, %v371, 0
  %v374 = vand.u32 %v362, %v372
  %376 = vmatprep.subr.bf16.mxu0 0
  %377 = vmatpush1.bf16.msra.mxu0 %v359
  %378 = vmatprep.subr.bf16.mxu0 0
  %379 = vmatpush1.bf16.msra.mxu0 %v360
  %380 = vmatprep.subr.bf16.mxu0 0
  %381 = vmatpush1.bf16.msra.mxu0 %v361
  %382 = vmatprep.subr.bf16.mxu0 0
  %383 = vmatpush1.bf16.msra.mxu0 %v374
  %384 = vmatprep.subr.bf16.mxu0 0
  %385 = vmatpush1.bf16.msra.mxu0 0
  %386 = vmatprep.subr.bf16.mxu0 0
  %387 = vmatpush1.bf16.msra.mxu0 0
  %388 = vmatprep.subr.bf16.mxu0 0
  %389 = vmatpush1.bf16.msra.mxu0 0
  %390 = vmatprep.subr.bf16.mxu0 0
  %391 = vmatpush1.bf16.msra.mxu0 0
  %392 = vmatprep.subr.bf16.mxu0 0
  %393 = vmatpush1.bf16.msra.mxu0 0
  %394 = vmatprep.subr.bf16.mxu0 0
  %395 = vmatpush1.bf16.msra.mxu0 0
  %396 = vmatprep.subr.bf16.mxu0 0
  %397 = vmatpush1.bf16.msra.mxu0 0
  %398 = vmatprep.subr.bf16.mxu0 0
  %399 = vmatpush1.bf16.msra.mxu0 0
  %400 = vmatprep.subr.bf16.mxu0 0
  %401 = vmatpush1.bf16.msra.mxu0 0
  %402 = vmatprep.subr.bf16.mxu0 0
  %403 = vmatpush1.bf16.msra.mxu0 0
  %404 = vmatprep.subr.bf16.mxu0 0
  %405 = vmatpush1.bf16.msra.mxu0 0
  %406 = vmatprep.subr.bf16.mxu0 0
  %407 = vmatpush1.bf16.msra.mxu0 0
  %408 = vmatprep.mubr.bf16.mxu0 0
  %409 = vmatmul.mubr.bf16.gmra.mrb[0].mxu0 %v368
  %v410 = vpop.f32.mrb[0].mxu0
  %v411 = vadd.f32 0.0, %v410
  %v412 = vpop.f32.mrb[0].mxu0
  %v413 = vpop.f32.mrb[0].mxu0
  %v414 = vadd.f32 0.0, %v413
  %v415 = vpop.f32.mrb[0].mxu0
  %416 = vdwg.mxu0
  %v417 = vld [vmem:[%s7] sm:$0xf]
  %v418 = vld [vmem:[%s7 + $0x4] sm:$0xf]
  %421 = vrot.lane.b32.xlu0 %v411, 127
  %v422 = vpop.permute.xlu0 %421
  %423 = vrot.lane.b32.xlu0 %v414, 127
  %v424 = vpop.permute.xlu0 %423
  %427 = vrot.lane.b32.xlu0 %v411, 126
  %v428 = vpop.permute.xlu0 %427
  %429 = vrot.lane.b32.xlu0 %v414, 126
  %v430 = vpop.permute.xlu0 %429
  %v433 = vpack.c.bf16 %v414, %v411
  %v434 = vpack.c.bf16 %v424, %v422
  %v435 = vpack.c.bf16 %v430, %v428
  %v436 = vld [vmem:[%s8] sm:$0xff]
  %v437 = vld [vmem:[%s8 + $0x8] sm:$0xff]
  %439 = vset.pattern.permute.xlu0 0
  %440 = vperm.xlu0 %439, %v436
  %v441 = vpop.permute.xlu0 %440
  %444 = vset.pattern.permute.xlu0 0
  %445 = vperm.xlu0 %444, %v437
  %v446 = vpop.permute.xlu0 %445
  %v450 = vunpack.c.l.b16 %v417
  %v451 = vunpack.c.l.b16 %v418
  %v452 = vpack.c.b16 %v451, %v450
  %vm453 = vcmask 392192
  %v455 = vsel %vm453, %v452, 0
  %457 = vmatprep.subr.bf16.mxu0 0
  %458 = vmatpush1.bf16.msra.mxu0 %v433
  %459 = vmatprep.subr.bf16.mxu0 0
  %460 = vmatpush1.bf16.msra.mxu0 %v434
  %461 = vmatprep.subr.bf16.mxu0 0
  %462 = vmatpush1.bf16.msra.mxu0 %v435
  %463 = vmatprep.subr.bf16.mxu0 0
  %464 = vmatpush1.bf16.msra.mxu0 0
  %465 = vmatprep.subr.bf16.mxu0 0
  %466 = vmatpush1.bf16.msra.mxu0 0
  %467 = vmatprep.subr.bf16.mxu0 0
  %468 = vmatpush1.bf16.msra.mxu0 0
  %469 = vmatprep.subr.bf16.mxu0 0
  %470 = vmatpush1.bf16.msra.mxu0 0
  %471 = vmatprep.subr.bf16.mxu0 0
  %472 = vmatpush1.bf16.msra.mxu0 0
  %473 = vmatprep.subr.bf16.mxu0 0
  %474 = vmatpush1.bf16.msra.mxu0 0
  %475 = vmatprep.subr.bf16.mxu0 0
  %476 = vmatpush1.bf16.msra.mxu0 0
  %477 = vmatprep.subr.bf16.mxu0 0
  %478 = vmatpush1.bf16.msra.mxu0 0
  %479 = vmatprep.subr.bf16.mxu0 0
  %480 = vmatpush1.bf16.msra.mxu0 0
  %481 = vmatprep.subr.bf16.mxu0 0
  %482 = vmatpush1.bf16.msra.mxu0 0
  %483 = vmatprep.subr.bf16.mxu0 0
  %484 = vmatpush1.bf16.msra.mxu0 0
  %485 = vmatprep.subr.bf16.mxu0 0
  %486 = vmatpush1.bf16.msra.mxu0 0
  %487 = vmatprep.subr.bf16.mxu0 0
  %488 = vmatpush1.bf16.msra.mxu0 0
  %489 = vmatprep.mubr.bf16.mxu0 0
  %490 = vmatmul.mubr.bf16.gmra.mrb[0].mxu0 %v455
  %v491 = vpop.f32.mrb[0].mxu0
  %v492 = vadd.f32 %v441, %v491
  %v493 = vpop.f32.mrb[0].mxu0
  %v494 = vpop.f32.mrb[0].mxu0
  %v495 = vadd.f32 %v446, %v494
  %v496 = vpop.f32.mrb[0].mxu0
  %497 = vdwg.mxu0
  %vm498 = vcmp.ge.f32.partialorder %v492, 0.0
  %vm499 = vcmp.ge.f32.partialorder %v495, 0.0
  %v500 = vmul.f32 %v119, %v492
  %v501 = vmul.f32 %v119, %v495
  %v502 = vsel %vm498, %v492, %v500
  %v503 = vsel %vm499, %v495, %v501
  %506 = vrot.lane.b32.xlu0 %v502, 127
  %v507 = vpop.permute.xlu0 %506
  %508 = vrot.lane.b32.xlu0 %v503, 127
  %v509 = vpop.permute.xlu0 %508
  %v512 = vmax.f32 %v502, %v507
  %v513 = vmax.f32 %v503, %v509
  %v514 = vld [vmem:[%s9] sm:$0xf]
  %v515 = vld [vmem:[%s9 + $0x4] sm:$0xf]
  %v516 = vld [vmem:[%s9 + $0x8] sm:$0xf]
  %v517 = vld [vmem:[%s9 + $0xc] sm:$0x1]
  %v518 = vpack.c.bf16 %v513, %v512
  %v523 = vunpack.c.l.b16 %v514
  %v524 = vunpack.c.l.b16 %v515
  %v525 = vunpack.c.l.b16 %v516
  %v526 = vunpack.c.l.b16 %v517
  %v527 = vpack.c.b16 %v524, %v523
  %v528 = vpack.c.b16 %v526, %v525
  %vm530 = vcmask 203776
  %v532 = vsel %vm530, %v518, 0
  %v534 = vsel %vm273, 4294967295, 65535
  %v535 = vsel %vm370, %v534, 0
  %v537 = vand.u32 %v528, %v535
  %539 = vmatprep.subr.bf16.mxu0 0
  %540 = vmatpush1.bf16.msra.mxu0 %v527
  %541 = vmatprep.subr.bf16.mxu0 0
  %542 = vmatpush1.bf16.msra.mxu0 %v537
  %543 = vmatprep.subr.bf16.mxu0 0
  %544 = vmatpush1.bf16.msra.mxu0 0
  %545 = vmatprep.subr.bf16.mxu0 0
  %546 = vmatpush1.bf16.msra.mxu0 0
  %547 = vmatprep.subr.bf16.mxu0 0
  %548 = vmatpush1.bf16.msra.mxu0 0
  %549 = vmatprep.subr.bf16.mxu0 0
  %550 = vmatpush1.bf16.msra.mxu0 0
  %551 = vmatprep.subr.bf16.mxu0 0
  %552 = vmatpush1.bf16.msra.mxu0 0
  %553 = vmatprep.subr.bf16.mxu0 0
  %554 = vmatpush1.bf16.msra.mxu0 0
  %555 = vmatprep.subr.bf16.mxu0 0
  %556 = vmatpush1.bf16.msra.mxu0 0
  %557 = vmatprep.subr.bf16.mxu0 0
  %558 = vmatpush1.bf16.msra.mxu0 0
  %559 = vmatprep.subr.bf16.mxu0 0
  %560 = vmatpush1.bf16.msra.mxu0 0
  %561 = vmatprep.subr.bf16.mxu0 0
  %562 = vmatpush1.bf16.msra.mxu0 0
  %563 = vmatprep.subr.bf16.mxu0 0
  %564 = vmatpush1.bf16.msra.mxu0 0
  %565 = vmatprep.subr.bf16.mxu0 0
  %566 = vmatpush1.bf16.msra.mxu0 0
  %567 = vmatprep.subr.bf16.mxu0 0
  %568 = vmatpush1.bf16.msra.mxu0 0
  %569 = vmatprep.subr.bf16.mxu0 0
  %570 = vmatpush1.bf16.msra.mxu0 0
  %571 = vmatprep.mubr.bf16.mxu0 0
  %572 = vmatmul.mubr.bf16.gmra.mrb[0].mxu0 %v532
  %v573 = vpop.f32.mrb[0].mxu0
  %v574 = vadd.f32 0.0, %v573
  %v575 = vpop.f32.mrb[0].mxu0
  %v576 = vpop.f32.mrb[0].mxu0
  %v577 = vadd.f32 0.0, %v576
  %v578 = vpop.f32.mrb[0].mxu0
  %579 = vdwg.mxu0
  %v580 = vld [vmem:[%s10] sm:$0xf]
  %v581 = vld [vmem:[%s10 + $0x4] sm:$0xf]
  %584 = vrot.lane.b32.xlu0 %v574, 127
  %v585 = vpop.permute.xlu0 %584
  %586 = vrot.lane.b32.xlu0 %v577, 127
  %v587 = vpop.permute.xlu0 %586
  %590 = vrot.lane.b32.xlu0 %v574, 126
  %v591 = vpop.permute.xlu0 %590
  %592 = vrot.lane.b32.xlu0 %v577, 126
  %v593 = vpop.permute.xlu0 %592
  %596 = vrot.lane.b32.xlu0 %v574, 125
  %v597 = vpop.permute.xlu0 %596
  %598 = vrot.lane.b32.xlu0 %v577, 125
  %v599 = vpop.permute.xlu0 %598
  %602 = vrot.lane.b32.xlu0 %v574, 124
  %v603 = vpop.permute.xlu0 %602
  %604 = vrot.lane.b32.xlu0 %v577, 124
  %v605 = vpop.permute.xlu0 %604
  %608 = vrot.lane.b32.xlu0 %v574, 123
  %v609 = vpop.permute.xlu0 %608
  %610 = vrot.lane.b32.xlu0 %v577, 123
  %v611 = vpop.permute.xlu0 %610
  %v614 = vpack.c.bf16 %v577, %v574
  %v615 = vpack.c.bf16 %v587, %v585
  %v616 = vpack.c.bf16 %v593, %v591
  %v617 = vpack.c.bf16 %v599, %v597
  %v618 = vpack.c.bf16 %v605, %v603
  %v619 = vpack.c.bf16 %v611, %v609
  %v622 = vunpack.c.l.b16 %v580
  %v623 = vunpack.c.l.b16 %v581
  %v624 = vpack.c.b16 %v623, %v622
  %vm625 = vcmask 785408
  %v627 = vsel %vm625, %v624, 0
  %629 = vmatprep.subr.bf16.mxu0 0
  %630 = vmatpush1.bf16.msra.mxu0 %v614
  %631 = vmatprep.subr.bf16.mxu0 0
  %632 = vmatpush1.bf16.msra.mxu0 %v615
  %633 = vmatprep.subr.bf16.mxu0 0
  %634 = vmatpush1.bf16.msra.mxu0 %v616
  %635 = vmatprep.subr.bf16.mxu0 0
  %636 = vmatpush1.bf16.msra.mxu0 %v617
  %637 = vmatprep.subr.bf16.mxu0 0
  %638 = vmatpush1.bf16.msra.mxu0 %v618
  %639 = vmatprep.subr.bf16.mxu0 0
  %640 = vmatpush1.bf16.msra.mxu0 %v619
  %641 = vmatprep.subr.bf16.mxu0 0
  %642 = vmatpush1.bf16.msra.mxu0 0
  %643 = vmatprep.subr.bf16.mxu0 0
  %644 = vmatpush1.bf16.msra.mxu0 0
  %645 = vmatprep.subr.bf16.mxu0 0
  %646 = vmatpush1.bf16.msra.mxu0 0
  %647 = vmatprep.subr.bf16.mxu0 0
  %648 = vmatpush1.bf16.msra.mxu0 0
  %649 = vmatprep.subr.bf16.mxu0 0
  %650 = vmatpush1.bf16.msra.mxu0 0
  %651 = vmatprep.subr.bf16.mxu0 0
  %652 = vmatpush1.bf16.msra.mxu0 0
  %653 = vmatprep.subr.bf16.mxu0 0
  %654 = vmatpush1.bf16.msra.mxu0 0
  %655 = vmatprep.subr.bf16.mxu0 0
  %656 = vmatpush1.bf16.msra.mxu0 0
  %657 = vmatprep.subr.bf16.mxu0 0
  %658 = vmatpush1.bf16.msra.mxu0 0
  %659 = vmatprep.subr.bf16.mxu0 0
  %660 = vmatpush1.bf16.msra.mxu0 0
  %661 = vmatprep.mubr.bf16.mxu0 0
  %662 = vmatmul.mubr.bf16.gmra.mrb[0].mxu0 %v627
  %v663 = vpop.f32.mrb[0].mxu0
  %v664 = vadd.f32 0.0, %v663
  %v665 = vpop.f32.mrb[0].mxu0
  %v666 = vpop.f32.mrb[0].mxu0
  %v667 = vadd.f32 0.0, %v666
  %v668 = vpop.f32.mrb[0].mxu0
  %669 = vdwg.mxu0
  %v670 = vld [vmem:[%s11] sm:$0xf]
  %v671 = vpack.c.bf16 %v667, %v664
  %v672 = vld [vmem:[%s12] sm:$0xff]
  %v673 = vld [vmem:[%s12 + $0x8] sm:$0xff]
  %675 = vset.pattern.permute.xlu0 0
  %676 = vperm.xlu0 %675, %v672
  %v677 = vpop.permute.xlu0 %676
  %680 = vset.pattern.permute.xlu0 0
  %681 = vperm.xlu0 %680, %v673
  %v682 = vpop.permute.xlu0 %681
  %vm684 = vcmask 56320
  %v686 = vsel %vm684, %v671, 0
  %vm688 = vcmask 1042432
  %v689 = vsel %vm688, 4294967295, 65535
  %v690 = vsel %vm273, %v689, 0
  %v692 = vand.u32 %v670, %v690
  %694 = vmatprep.subr.bf16.mxu0 0
  %695 = vmatpush1.bf16.msra.mxu0 %v692
  %696 = vmatprep.subr.bf16.mxu0 0
  %697 = vmatpush1.bf16.msra.mxu0 0
  %698 = vmatprep.subr.bf16.mxu0 0
  %699 = vmatpush1.bf16.msra.mxu0 0
  %700 = vmatprep.subr.bf16.mxu0 0
  %701 = vmatpush1.bf16.msra.mxu0 0
  %702 = vmatprep.subr.bf16.mxu0 0
  %703 = vmatpush1.bf16.msra.mxu0 0
  %704 = vmatprep.subr.bf16.mxu0 0
  %705 = vmatpush1.bf16.msra.mxu0 0
  %706 = vmatprep.subr.bf16.mxu0 0
  %707 = vmatpush1.bf16.msra.mxu0 0
  %708 = vmatprep.subr.bf16.mxu0 0
  %709 = vmatpush1.bf16.msra.mxu0 0
  %710 = vmatprep.subr.bf16.mxu0 0
  %711 = vmatpush1.bf16.msra.mxu0 0
  %712 = vmatprep.subr.bf16.mxu0 0
  %713 = vmatpush1.bf16.msra.mxu0 0
  %714 = vmatprep.subr.bf16.mxu0 0
  %715 = vmatpush1.bf16.msra.mxu0 0
  %716 = vmatprep.subr.bf16.mxu0 0
  %717 = vmatpush1.bf16.msra.mxu0 0
  %718 = vmatprep.subr.bf16.mxu0 0
  %719 = vmatpush1.bf16.msra.mxu0 0
  %720 = vmatprep.subr.bf16.mxu0 0
  %721 = vmatpush1.bf16.msra.mxu0 0
  %722 = vmatprep.subr.bf16.mxu0 0
  %723 = vmatpush1.bf16.msra.mxu0 0
  %724 = vmatprep.subr.bf16.mxu0 0
  %725 = vmatpush1.bf16.msra.mxu0 0
  %726 = vmatprep.mubr.bf16.mxu0 0
  %727 = vmatmul.mubr.bf16.gmra.mrb[0].mxu0 %v686
  %v728 = vpop.f32.mrb[0].mxu0
  %v729 = vadd.f32 %v677, %v728
  %v730 = vpop.f32.mrb[0].mxu0
  %v731 = vpop.f32.mrb[0].mxu0
  %v732 = vadd.f32 %v682, %v731
  %v733 = vpop.f32.mrb[0].mxu0
  %734 = vdwg.mxu0
  %vm735 = vcmp.ge.f32.partialorder %v729, 0.0
  %vm736 = vcmp.ge.f32.partialorder %v732, 0.0
  %v737 = vmul.f32 %v119, %v729
  %v738 = vmul.f32 %v119, %v732
  %v739 = vsel %vm735, %v729, %v737
  %v740 = vsel %vm736, %v732, %v738
  %v741 = vld [vmem:[%s13] sm:$0xf]
  %v742 = vpack.c.bf16 %v740, %v739
  %v743 = vld [vmem:[%s14] sm:$0x7f]
  %745 = vset.pattern.permute.xlu0 0
  %746 = vperm.xlu0 %745, %v743
  %v747 = vpop.permute.xlu0 %746
  %vm749 = vcmask 130048
  %v751 = vsel %vm749, %v741, 0
  %753 = vmatprep.subr.bf16.mxu0 0
  %754 = vmatpush1.bf16.msra.mxu0 %v742
  %755 = vmatprep.subr.bf16.mxu0 0
  %756 = vmatpush1.bf16.msra.mxu0 0
  %757 = vmatprep.subr.bf16.mxu0 0
  %758 = vmatpush1.bf16.msra.mxu0 0
  %759 = vmatprep.subr.bf16.mxu0 0
  %760 = vmatpush1.bf16.msra.mxu0 0
  %761 = vmatprep.subr.bf16.mxu0 0
  %762 = vmatpush1.bf16.msra.mxu0 0
  %763 = vmatprep.subr.bf16.mxu0 0
  %764 = vmatpush1.bf16.msra.mxu0 0
  %765 = vmatprep.subr.bf16.mxu0 0
  %766 = vmatpush1.bf16.msra.mxu0 0
  %767 = vmatprep.subr.bf16.mxu0 0
  %768 = vmatpush1.bf16.msra.mxu0 0
  %769 = vmatprep.subr.bf16.mxu0 0
  %770 = vmatpush1.bf16.msra.mxu0 0
  %771 = vmatprep.subr.bf16.mxu0 0
  %772 = vmatpush1.bf16.msra.mxu0 0
  %773 = vmatprep.subr.bf16.mxu0 0
  %774 = vmatpush1.bf16.msra.mxu0 0
  %775 = vmatprep.subr.bf16.mxu0 0
  %776 = vmatpush1.bf16.msra.mxu0 0
  %777 = vmatprep.subr.bf16.mxu0 0
  %778 = vmatpush1.bf16.msra.mxu0 0
  %779 = vmatprep.subr.bf16.mxu0 0
  %780 = vmatpush1.bf16.msra.mxu0 0
  %781 = vmatprep.subr.bf16.mxu0 0
  %782 = vmatpush1.bf16.msra.mxu0 0
  %783 = vmatprep.subr.bf16.mxu0 0
  %784 = vmatpush1.bf16.msra.mxu0 0
  %785 = vmatprep.mubr.bf16.mxu0 0
  %786 = vmatmul.mubr.bf16.gmra.mrb[0].mxu0 %v751
  %v787 = vpop.f32.mrb[0].mxu0
  %v788 = vadd.f32 %v747, %v787
  %v789 = vpop.f32.mrb[0].mxu0
  %v790 = vpop.f32.mrb[0].mxu0
  %v791 = vpop.f32.mrb[0].mxu0
  %792 = vdwg.mxu0
  %v793 = vmax.f32 %v788, 0.0
  %v794 = vand.u32 2147483647, %v788
  %v795 = vsub.f32 0.0, %v794
  %v796 = vmul.f32 %v795, 1.442695
  %v797 = vpow.pop %v796
  %v798 = vadd.f32 %v797, 1.0
  %v799 = vlog2.pop %v798
  %v800 = vmul.f32 %v799, 0.6931472
  %v801 = vadd.f32 %v793, %v800
  %vm802 = vcmask 14336
  %v803 = vsel %vm802, %v801, 0.0
  %v804 = vrot.slane %v803, 4
  %v805 = vadd.f32 %v803, %v804
  %v806 = vrot.slane %v805, 2
  %v807 = vadd.f32 %v805, %v806
  %v808 = vrot.slane %v807, 1
  %v809 = vadd.f32 %v807, %v808
  %v810 = vrcp.pop %v809
  %v811 = vmul.f32 %v801, %v810
  %812 = vst.msk [vmem:[%s16] sm:$0x7f] %vm802, %v811
  // Predicated region
  $region66: #{tpu_custom_call.1} parent=0 // pred_check
    _
  $region67: #{tpu_custom_call.1} parent=0 // pred_check_branch
    %814 = sbr.rel (0) target = $region69
  $region68: #{tpu_custom_call.1} parent=0 // pred_region
    _
  $region69: #{tpu_custom_call.1} parent=0 // pred_fallthru
    _
  // Predicated region
  $region70: #{tpu_custom_call.1} parent=0 // pred_check
    _
  $region71: #{tpu_custom_call.1} parent=0 // pred_check_branch
    %816 = sbr.rel (0) target = $region73
  $region72: #{tpu_custom_call.1} parent=0 // pred_region
    _
  $region73: #{tpu_custom_call.1} parent=0 // pred_fallthru
    _

</llo_original>
